<compile_context>
chip_gen: v7x
topology: tpu7x:2x2x1
jax: 0.10.0
libtpu: 0.0.40
codegen_flags: <defaults>
</compile_context>

<pallas_src>
import math

import jax
import jax.numpy as jnp
from jax.experimental import pallas as pl
from jax.experimental.pallas import tpu as pltpu


# ---------------------------------------------------------------------------
# Kernel
# ---------------------------------------------------------------------------
def _mlp_kernel(x_ref, w1_ref, b1_ref, w2_ref, b2_ref, o_ref):
    # x_ref : (BB, 12, TN)   activation dtype, N on the lane axis (lane-dense)
    # w1_ref: (hide, 12)     activation dtype (resident in VMEM)
    # b1_ref: (hide, 1)      f32
    # w2_ref: (out, hide)    activation dtype
    # b2_ref: (out, 1)       f32
    # o_ref : (BB, TN, out)  activation dtype (reference layout, no host swap)
    w1 = w1_ref[...]
    b1 = b1_ref[...]
    w2 = w2_ref[...]
    b2 = b2_ref[...]
    for bb in range(x_ref.shape[0]):          # static, small (<= 8): unrolled
        x = x_ref[bb]                                              # (12, TN)
        h = jnp.dot(w1, x, preferred_element_type=jnp.float32) + b1
        h = jnp.maximum(h, 0.0).astype(w2.dtype)                   # ReLU
        y = jnp.dot(w2, h, preferred_element_type=jnp.float32) + b2  # (out, TN) f32
        # Small XLU transpose of the (out, TN) tile -> store (TN, out) directly.
        o_ref[bb] = y.T.astype(o_ref.dtype)


# ---------------------------------------------------------------------------
# Tiling heuristic
# ---------------------------------------------------------------------------
def _round_up(x, m):
    return (x + m - 1) // m * m


def _choose_tiles(b, n, out_dim, itemsize):
    """Pick (batch_block BB, lane_tile TN).

    Goals (kernel is HBM / per-step-overhead bound):
      * >= ~1 MiB of real HBM payload per grid step (amortize ~0.35 us/step),
      * double-buffered VMEM tiles (incl. lane-padded (TN, out) output tile)
        kept well under the scoped-VMEM limit on v5e/v6e/v7x,
      * >= 2 (ideally >= 4) grid steps for pipelining + v7x megacore.
    """
    LANE = 128
    # VMEM bytes per lane column: 2 pipeline buffers x (padded x-tile + padded
    # (TN, out) output tile; out_dim < 128 pads the lane dim to 128).
    vmem_per_col = 2 * (_round_up(12, 8) + _round_up(out_dim, LANE)) * itemsize
    tn_cap = (10 * 2**20) // vmem_per_col
    tn_cap = max(LANE, (tn_cap // LANE) * LANE)
    tn_cap = min(tn_cap, 32768)

    tn = n if n <= tn_cap else tn_cap
    n_tiles = pl.cdiv(n, tn)

    # Batch blocking: raise per-step payload for small N, but keep enough steps.
    payload_per_row = (12 + out_dim) * itemsize * tn      # real HBM bytes/row/tile
    bb = max(1, min(8, (1 << 20) // max(payload_per_row, 1)))
    bb = min(bb, b)
    min_steps = min(4, b * n_tiles)
    while bb > 1 and pl.cdiv(b, bb) * n_tiles < min_steps:
        bb -= 1

    # If the grid collapsed to a single step (b small, n moderate), split N:
    # a 1-step grid forfeits pipelining and idles one v7x TensorCore.
    if pl.cdiv(b, bb) * n_tiles < 2 and n >= 2 * LANE:
        want = min(4, n // LANE)
        tn = min(_round_up(pl.cdiv(n, want), LANE), (n // LANE) * LANE)
    return bb, tn


# ---------------------------------------------------------------------------
# Wrapper (equivalent of R.forward)
# ---------------------------------------------------------------------------
def r_forward(r, w1, b1, w2, b2):
    """r: (..., 12, N); w1: (hide, 12); b1: (hide,); w2: (out, hide); b2: (out,)
    returns (..., N, out) — same semantics as the PyTorch module."""
    assert r.shape[-2] == 12
    lead = r.shape[:-2]
    n = r.shape[-1]
    b = int(math.prod(lead))                 # == 1 when lead is empty
    hide = w1.shape[0]
    out_dim = w2.shape[0]
    itemsize = jnp.dtype(r.dtype).itemsize

    x = r.reshape(b, 12, n)                  # no transpose of the big input

    # Weights cast once to the activation dtype (MXU consumes bf16 natively on
    # v6e/v7x); biases stay f32 and are added to the f32 accumulator.
    w1c = w1.astype(r.dtype)
    w2c = w2.astype(r.dtype)
    b1c = b1.astype(jnp.float32).reshape(hide, 1)
    b2c = b2.astype(jnp.float32).reshape(out_dim, 1)

    bb, tn = _choose_tiles(b, n, out_dim, itemsize)
    grid = (pl.cdiv(b, bb), pl.cdiv(n, tn))

    flops = 2 * b * n * (12 * hide + hide * out_dim)
    bytes_accessed = ((b * 12 * n + b * n * out_dim) * itemsize
                      + (w1c.size + w2c.size) * itemsize
                      + (b1c.size + b2c.size) * 4)

    y = pl.pallas_call(
        _mlp_kernel,
        out_shape=jax.ShapeDtypeStruct((b, n, out_dim), r.dtype),
        grid=grid,
        in_specs=[
            pl.BlockSpec((bb, 12, tn), lambda i, j: (i, 0, j)),      # x tile
            pl.BlockSpec((hide, 12), lambda i, j: (0, 0)),           # W1 (resident)
            pl.BlockSpec((hide, 1), lambda i, j: (0, 0)),            # b1 (resident)
            pl.BlockSpec((out_dim, hide), lambda i, j: (0, 0)),      # W2 (resident)
            pl.BlockSpec((out_dim, 1), lambda i, j: (0, 0)),         # b2 (resident)
        ],
        out_specs=pl.BlockSpec((bb, tn, out_dim), lambda i, j: (i, j, 0)),
        compiler_params=pltpu.CompilerParams(
            dimension_semantics=("parallel", "parallel"),            # v7x megacore
            vmem_limit_bytes=32 * 1024 * 1024),
        cost_estimate=pl.CostEstimate(flops=flops, transcendentals=0,
                                      bytes_accessed=bytes_accessed),
    )(x, w1c, b1c, w2c, b2c)

    return y.reshape(*lead, n, out_dim)


# ---------------------------------------------------------------------------
# Parameter init (matches the PyTorch init_wb: xavier_uniform weights, zero bias)
# ---------------------------------------------------------------------------
def _xavier_uniform(key, fan_out, fan_in):
    bound = math.sqrt(6.0 / (fan_in + fan_out))
    return jax.random.uniform(key, (fan_out, fan_in), jnp.float32, -bound, bound)


def make_params(key, output_dim, hide_dim=12):
    k1, k2 = jax.random.split(key)
    w1 = _xavier_uniform(k1, hide_dim, 12)          # (hide, 12)  torch (out, in)
    b1 = jnp.zeros((hide_dim,), jnp.float32)
    w2 = _xavier_uniform(k2, output_dim, hide_dim)  # (out, hide)
    b2 = jnp.zeros((output_dim,), jnp.float32)
    return w1, b1, w2, b2


if __name__ == "__main__":
    key = jax.random.PRNGKey(0)
    k_in, k_par, k_in2, k_in3 = jax.random.split(key, 4)

    output_dim, hide_dim = 8, 12
    w1, b1, w2, b2 = make_params(k_par, output_dim, hide_dim)

    def ref_forward(r, w1, b1, w2, b2):
        x = jnp.swapaxes(r, -1, -2).astype(jnp.float32)
        h = jnp.maximum(x @ w1.astype(jnp.float32).T + b1, 0.0)
        return h @ w2.astype(jnp.float32).T + b2

    # 1) f32, lane-aligned N
    r = jax.random.normal(k_in, (2, 12, 256), jnp.float32)
    out = r_forward(r, w1, b1, w2, b2)
    jax.block_until_ready(out)
    assert out.shape == (2, 256, output_dim)
    assert jnp.allclose(out, ref_forward(r, w1, b1, w2, b2), atol=1e-5, rtol=1e-5)

    # 2) N not a multiple of 128 (masked writeback / odd-shape paths)
    r2 = jax.random.normal(k_in2, (3, 12, 200), jnp.float32)
    out2 = r_forward(r2, w1, b1, w2, b2)
    jax.block_until_ready(out2)
    assert out2.shape == (3, 200, output_dim)
    assert jnp.allclose(out2, ref_forward(r2, w1, b1, w2, b2), atol=1e-5, rtol=1e-5)

    # 3) bf16 end-to-end (halves HBM traffic on v6e/v7x); looser tolerance.
    r3 = jax.random.normal(k_in3, (2, 12, 384), jnp.float32).astype(jnp.bfloat16)
    out3 = r_forward(r3, w1, b1, w2, b2)
    jax.block_until_ready(out3)
    ref3 = ref_forward(r3.astype(jnp.float32),
                       w1.astype(jnp.bfloat16).astype(jnp.float32), b1,
                       w2.astype(jnp.bfloat16).astype(jnp.float32), b2)
    assert out3.shape == (2, 384, output_dim)
    assert jnp.allclose(out3.astype(jnp.float32), ref3, atol=7e-2, rtol=7e-2)

    print("KERNEL_OK")
</pallas_src>

<mosaic_0001>
module attributes {stable_mosaic.version = 11 : i64} {
  func.func @_mlp_kernel(%arg0: i32, %arg1: i32, %arg2: memref<1x12x256xf32, #tpu.memory_space<vmem>>, %arg3: memref<12x12xf32, #tpu.memory_space<vmem>>, %arg4: memref<12x1xf32, #tpu.memory_space<vmem>>, %arg5: memref<8x12xf32, #tpu.memory_space<vmem>>, %arg6: memref<8x1xf32, #tpu.memory_space<vmem>>, %arg7: memref<1x256x8xf32, #tpu.memory_space<vmem>>) attributes {dimension_semantics = [#tpu.dimension_semantics<parallel>, #tpu.dimension_semantics<parallel>], iteration_bounds = array<i64: 2, 1>, scalar_prefetch = 0 : i64, scratch_operands = 0 : i64, tpu.core_type = #tpu.core_type<tc>, window_params = [{transform_indices = @transform_0, window_bounds = array<i64: 1, 12, 256>}, {pipeline_mode = #tpu.pipeline_mode<synchronous>, transform_indices = @transform_1, window_bounds = array<i64: 12, 12>}, {pipeline_mode = #tpu.pipeline_mode<synchronous>, transform_indices = @transform_2, window_bounds = array<i64: 12, 1>}, {pipeline_mode = #tpu.pipeline_mode<synchronous>, transform_indices = @transform_3, window_bounds = array<i64: 8, 12>}, {pipeline_mode = #tpu.pipeline_mode<synchronous>, transform_indices = @transform_4, window_bounds = array<i64: 8, 1>}, {transform_indices = @transform_5, window_bounds = array<i64: 1, 256, 8>}]} {
    %c0 = arith.constant 0 : index
    %c0_0 = arith.constant 0 : index
    %0 = vector.load %arg3[%c0, %c0_0] : memref<12x12xf32, #tpu.memory_space<vmem>>, vector<12x12xf32>
    %c0_1 = arith.constant 0 : index
    %c0_2 = arith.constant 0 : index
    %1 = vector.load %arg4[%c0_1, %c0_2] : memref<12x1xf32, #tpu.memory_space<vmem>>, vector<12x1xf32>
    %c0_3 = arith.constant 0 : index
    %c0_4 = arith.constant 0 : index
    %2 = vector.load %arg5[%c0_3, %c0_4] : memref<8x12xf32, #tpu.memory_space<vmem>>, vector<8x12xf32>
    %c0_5 = arith.constant 0 : index
    %c0_6 = arith.constant 0 : index
    %3 = vector.load %arg6[%c0_5, %c0_6] : memref<8x1xf32, #tpu.memory_space<vmem>>, vector<8x1xf32>
    %c0_7 = arith.constant 0 : index
    %c0_8 = arith.constant 0 : index
    %c0_9 = arith.constant 0 : index
    %4 = vector.load %arg2[%c0_7, %c0_8, %c0_9] : memref<1x12x256xf32, #tpu.memory_space<vmem>>, vector<1x12x256xf32>
    %5 = vector.shape_cast %4 : vector<1x12x256xf32> to vector<12x256xf32>
    %cst = arith.constant dense<0.000000e+00> : vector<12x256xf32>
    %6 = tpu.matmul %0, %5, %cst {dimension_numbers = #tpu.dot_dimension_numbers<[1], [0], [0], [1], [0, 0, 1, 1], [], []>} : vector<12x12xf32>, vector<12x256xf32>, vector<12x256xf32> -> vector<12x256xf32>
    %7 = vector.broadcast %1 : vector<12x1xf32> to vector<12x256xf32>
    %8 = arith.addf %6, %7 : vector<12x256xf32>
    %cst_10 = arith.constant 0.000000e+00 : f32
    %9 = vector.broadcast %cst_10 : f32 to vector<12x256xf32>
    %10 = arith.maximumf %8, %9 : vector<12x256xf32>
    %cst_11 = arith.constant dense<0.000000e+00> : vector<8x256xf32>
    %11 = tpu.matmul %2, %10, %cst_11 {dimension_numbers = #tpu.dot_dimension_numbers<[1], [0], [0], [1], [0, 0, 1, 1], [], []>} : vector<8x12xf32>, vector<12x256xf32>, vector<8x256xf32> -> vector<8x256xf32>
    %12 = vector.broadcast %3 : vector<8x1xf32> to vector<8x256xf32>
    %13 = arith.addf %11, %12 : vector<8x256xf32>
    %14 = tpu.transpose %13, [1, 0] : vector<8x256xf32> -> vector<256x8xf32>
    %c0_12 = arith.constant 0 : index
    %c0_13 = arith.constant 0 : index
    %c0_14 = arith.constant 0 : index
    %15 = vector.load %arg7[%c0_12, %c0_13, %c0_14] : memref<1x256x8xf32, #tpu.memory_space<vmem>>, vector<1x256x8xf32>
    %16 = vector.shape_cast %15 : vector<1x256x8xf32> to vector<256x8xf32>
    %17 = vector.shape_cast %14 : vector<256x8xf32> to vector<1x256x8xf32>
    tpu.vector_store %arg7[%c0_12, %c0_13, %c0_14], %17 {strides = array<i32>} : memref<1x256x8xf32, #tpu.memory_space<vmem>>, vector<1x256x8xf32>,
    return
  }
  func.func @transform_0(%arg0: i32, %arg1: i32) -> (i32, i32, i32) {
    %c0_i32 = arith.constant 0 : i32
    %c0_i32_0 = arith.constant 0 : i32
    return %arg0, %c0_i32, %arg1 : i32, i32, i32
  }
  func.func @transform_1(%arg0: i32, %arg1: i32) -> (i32, i32) {
    %c0_i32 = arith.constant 0 : i32
    %c0_i32_0 = arith.constant 0 : i32
    %c0_i32_1 = arith.constant 0 : i32
    return %c0_i32, %c0_i32_0 : i32, i32
  }
  func.func @transform_2(%arg0: i32, %arg1: i32) -> (i32, i32) {
    %c0_i32 = arith.constant 0 : i32
    %c0_i32_0 = arith.constant 0 : i32
    %c0_i32_1 = arith.constant 0 : i32
    return %c0_i32, %c0_i32_0 : i32, i32
  }
  func.func @transform_3(%arg0: i32, %arg1: i32) -> (i32, i32) {
    %c0_i32 = arith.constant 0 : i32
    %c0_i32_0 = arith.constant 0 : i32
    %c0_i32_1 = arith.constant 0 : i32
    return %c0_i32, %c0_i32_0 : i32, i32
  }
  func.func @transform_4(%arg0: i32, %arg1: i32) -> (i32, i32) {
    %c0_i32 = arith.constant 0 : i32
    %c0_i32_0 = arith.constant 0 : i32
    %c0_i32_1 = arith.constant 0 : i32
    return %c0_i32, %c0_i32_0 : i32, i32
  }
  func.func @transform_5(%arg0: i32, %arg1: i32) -> (i32, i32, i32) {
    %c0_i32 = arith.constant 0 : i32
    %c0_i32_0 = arith.constant 0 : i32
    return %arg0, %arg1, %c0_i32 : i32, i32, i32
  }
}

</mosaic_0001>

<llo_original>
// kernel: tpu_custom_call.1
$region0: #{tpu_custom_call.1}
  #allocation0 [shape = 'u32[]', space=smem, size = 0x4, offset = 0x4, fixed_abs, tag = 'smem constant byte address 0x4 - core index']
  #allocation1 [shape = 'u32[144,128]{1,0:T(1,128)}', space=vmem, size = 0x12000, scoped, tag = 'internal scratch']
  %s0 = inlined_call_operand.vmem [shape: f32[2,12,256], index: 0, kind: input, shape index: {}]
  %s1 = inlined_call_operand.vmem [shape: f32[12,12], index: 1, kind: input, shape index: {}]
  %s2 = inlined_call_operand.vmem [shape: f32[12,1], index: 2, kind: input, shape index: {}]
  %s3 = inlined_call_operand.vmem [shape: f32[8,12], index: 3, kind: input, shape index: {}]
  %s4 = inlined_call_operand.vmem [shape: f32[8,1], index: 4, kind: input, shape index: {}]
  %s5 = inlined_call_operand.vmem [shape: f32[2,256,8], index: 5, kind: output, shape index: {}]
  %s6 = sld [smem:[#allocation0]]
  $region53: #{tpu_custom_call.1} parent=0
    _
  %s8 = ssub.s32 1, %s6
  %s9 = scalar_select 0, %s8, %s6
  loop: start=0, step=1, limit=4
  $region2: #{tpu_custom_call.1} parent=0 // loop_pre_header
    _
  $region3: #{tpu_custom_call.1} parent=0 // loop_header
    %s11 = sphi 0, %s15
    %p12 = scmp.ge.s32.totalorder %s11, 4
    %s18 = sphi 0, %s30
    %s19 = sphi 0, %s26
    %s20 = sphi 0, %s18
    %s21 = sphi 0, %s19
    %s22 = sphi 0, %s20
    %s23 = sphi 0, %s21
    %s35 = sphi 0, %s37
    %s38 = sphi 0, %s35
    %s39 = sphi 0, %s38
    %s55 = sphi 0, %s39
    %s59 = sphi 0, %s59
    %s61 = sphi 0, %s59
    %s62 = sphi 0, %s61
    %s76 = sphi 0, %s62
    %s80 = sphi 0, %s80
    %s82 = sphi 0, %s80
    %s83 = sphi 0, %s82
    %s97 = sphi 0, %s83
    %s101 = sphi 0, %s101
    %s103 = sphi 0, %s101
    %s104 = sphi 0, %s103
    %s118 = sphi 0, %s104
    %s122 = sphi 0, %s122
    %s124 = sphi 0, %s122
    %s125 = sphi 0, %s124
    %s139 = sphi 0, %s125
    %s147 = sphi 0, %s149
    %s150 = sphi 0, %s147
    %s151 = sphi 0, %s150
    %s167 = sphi 0, %s151
  $region4: #{tpu_custom_call.1} parent=0 // loop_header_branch
    %14 = sbr.rel (%p12) target = $region8
  $region5: #{tpu_custom_call.1} parent=0 // loop_body
    %s16 = ssub.s32 %s11, 1
    %s17 = ssub.s32 %s11, 2
    %s24 = sadd.s32 1, %s19
    %p25 = scmp.ge.s32.totalorder %s24, 1
    %s26 = scalar_select %p25, 0, %s24
    %s27 = sadd.s32 1, %s18
    %s28 = scalar_select %p25, %s27, %s18
    %p29 = scmp.ge.s32.totalorder %s28, 2
    %s30 = scalar_select %p29, 0, %s28
    %s31 = ssub.s32 %s18, %s30
    %s32 = ssub.s32 %s19, %s26
    %s33 = sor.u32 %s31, %s32
    %p34 = scmp.eq.s32.totalorder %s33, 0
    %s36 = sadd.s32 %s35, 1
    %s37 = scalar_select %p34, %s35, %s36
    %p40 = pneg %p34
    %p41 = scmp.eq.s32.totalorder %s11, 1
    %p42 = por %p40, %p41
    %p43 = scmp.ne.s32.totalorder %s35, %s38
    %p44 = scmp.eq.s32.totalorder %s11, 0
    %p45 = por %p43, %p44
    %p46 = scmp.ne.s32.totalorder %s35, %s38
    %p47 = scmp.eq.s32.totalorder %s16, 1
    %p48 = por %p46, %p47
    %p49 = scmp.ne.s32.totalorder %s38, %s39
    %p50 = scmp.eq.s32.totalorder %s16, 0
    %p51 = por %p49, %p50
    %p52 = scmp.ne.s32.totalorder %s38, %s39
    %p53 = scmp.eq.s32.totalorder %s17, 1
    %p54 = por %p52, %p53
    %p56 = scmp.ne.s32.totalorder %s39, %s55
    %p57 = scmp.eq.s32.totalorder %s17, 0
    %p58 = por %p56, %p57
    %s60 = sadd.s32 %s59, 1
    %p63 = scmp.eq.s32.totalorder %s11, 1
    %p64 = scmp.ne.s32.totalorder %s59, %s61
    %p65 = scmp.eq.s32.totalorder %s11, 0
    %p66 = por %p64, %p65
    %p67 = scmp.ne.s32.totalorder %s59, %s61
    %p68 = scmp.eq.s32.totalorder %s16, 1
    %p69 = por %p67, %p68
    %p70 = scmp.ne.s32.totalorder %s61, %s62
    %p71 = scmp.eq.s32.totalorder %s16, 0
    %p72 = por %p70, %p71
    %p73 = scmp.ne.s32.totalorder %s61, %s62
    %p74 = scmp.eq.s32.totalorder %s17, 1
    %p75 = por %p73, %p74
    %p77 = scmp.ne.s32.totalorder %s62, %s76
    %p78 = scmp.eq.s32.totalorder %s17, 0
    %p79 = por %p77, %p78
    %s81 = sadd.s32 %s80, 1
    %p84 = scmp.eq.s32.totalorder %s11, 1
    %p85 = scmp.ne.s32.totalorder %s80, %s82
    %p86 = scmp.eq.s32.totalorder %s11, 0
    %p87 = por %p85, %p86
    %p88 = scmp.ne.s32.totalorder %s80, %s82
    %p89 = scmp.eq.s32.totalorder %s16, 1
    %p90 = por %p88, %p89
    %p91 = scmp.ne.s32.totalorder %s82, %s83
    %p92 = scmp.eq.s32.totalorder %s16, 0
    %p93 = por %p91, %p92
    %p94 = scmp.ne.s32.totalorder %s82, %s83
    %p95 = scmp.eq.s32.totalorder %s17, 1
    %p96 = por %p94, %p95
    %p98 = scmp.ne.s32.totalorder %s83, %s97
    %p99 = scmp.eq.s32.totalorder %s17, 0
    %p100 = por %p98, %p99
    %s102 = sadd.s32 %s101, 1
    %p105 = scmp.eq.s32.totalorder %s11, 1
    %p106 = scmp.ne.s32.totalorder %s101, %s103
    %p107 = scmp.eq.s32.totalorder %s11, 0
    %p108 = por %p106, %p107
    %p109 = scmp.ne.s32.totalorder %s101, %s103
    %p110 = scmp.eq.s32.totalorder %s16, 1
    %p111 = por %p109, %p110
    %p112 = scmp.ne.s32.totalorder %s103, %s104
    %p113 = scmp.eq.s32.totalorder %s16, 0
    %p114 = por %p112, %p113
    %p115 = scmp.ne.s32.totalorder %s103, %s104
    %p116 = scmp.eq.s32.totalorder %s17, 1
    %p117 = por %p115, %p116
    %p119 = scmp.ne.s32.totalorder %s104, %s118
    %p120 = scmp.eq.s32.totalorder %s17, 0
    %p121 = por %p119, %p120
    %s123 = sadd.s32 %s122, 1
    %p126 = scmp.eq.s32.totalorder %s11, 1
    %p127 = scmp.ne.s32.totalorder %s122, %s124
    %p128 = scmp.eq.s32.totalorder %s11, 0
    %p129 = por %p127, %p128
    %p130 = scmp.ne.s32.totalorder %s122, %s124
    %p131 = scmp.eq.s32.totalorder %s16, 1
    %p132 = por %p130, %p131
    %p133 = scmp.ne.s32.totalorder %s124, %s125
    %p134 = scmp.eq.s32.totalorder %s16, 0
    %p135 = por %p133, %p134
    %p136 = scmp.ne.s32.totalorder %s124, %s125
    %p137 = scmp.eq.s32.totalorder %s17, 1
    %p138 = por %p136, %p137
    %p140 = scmp.ne.s32.totalorder %s125, %s139
    %p141 = scmp.eq.s32.totalorder %s17, 0
    %p142 = por %p140, %p141
    %s143 = ssub.s32 %s18, %s30
    %s144 = ssub.s32 %s19, %s26
    %s145 = sor.u32 %s143, %s144
    %p146 = scmp.eq.s32.totalorder %s145, 0
    %s148 = sadd.s32 %s147, 1
    %s149 = scalar_select %p146, %s147, %s148
    %p152 = pneg %p146
    %p153 = scmp.eq.s32.totalorder %s11, 1
    %p154 = por %p152, %p153
    %p155 = scmp.ne.s32.totalorder %s147, %s150
    %p156 = scmp.eq.s32.totalorder %s11, 0
    %p157 = por %p155, %p156
    %p158 = scmp.ne.s32.totalorder %s147, %s150
    %p159 = scmp.eq.s32.totalorder %s16, 1
    %p160 = por %p158, %p159
    %p161 = scmp.ne.s32.totalorder %s150, %s151
    %p162 = scmp.eq.s32.totalorder %s16, 0
    %p163 = por %p161, %p162
    %p164 = scmp.ne.s32.totalorder %s150, %s151
    %p165 = scmp.eq.s32.totalorder %s17, 1
    %p166 = por %p164, %p165
    %p168 = scmp.ne.s32.totalorder %s151, %s167
    %p169 = scmp.eq.s32.totalorder %s17, 0
    %p170 = por %p168, %p169
    %p171 = scmp.le.s32.totalorder 1, %s11
    %p172 = scmp.lt.s32.totalorder %s11, 3
    %p173 = pnand %p171, %p172
    %p174 = pneg %p173
    // Predicated region
    $region9: #{tpu_custom_call.1} parent=5 // pred_check
      _
    $region10: #{tpu_custom_call.1} parent=5 // pred_check_branch
      %176 = sbr.rel (%p173) target = $region12
    $region11: #{tpu_custom_call.1} parent=5 // pred_region
      %s177 = ssub.s32 %s11, 1
      // Predicated region
      $region13: #{tpu_custom_call.1} parent=11 // pred_check
        %p178 = pneg %p72
      $region14: #{tpu_custom_call.1} parent=11 // pred_check_branch
        %180 = sbr.rel (%p178) target = $region16
      $region15: #{tpu_custom_call.1} parent=11 // pred_region
        _
      $region16: #{tpu_custom_call.1} parent=11 // pred_fallthru
        _
      // Predicated region
      $region17: #{tpu_custom_call.1} parent=11 // pred_check
        %p181 = pneg %p93
      $region18: #{tpu_custom_call.1} parent=11 // pred_check_branch
        %183 = sbr.rel (%p181) target = $region20
      $region19: #{tpu_custom_call.1} parent=11 // pred_region
        _
      $region20: #{tpu_custom_call.1} parent=11 // pred_fallthru
        _
      // Predicated region
      $region21: #{tpu_custom_call.1} parent=11 // pred_check
        %p184 = pneg %p114
      $region22: #{tpu_custom_call.1} parent=11 // pred_check_branch
        %186 = sbr.rel (%p184) target = $region24
      $region23: #{tpu_custom_call.1} parent=11 // pred_region
        _
      $region24: #{tpu_custom_call.1} parent=11 // pred_fallthru
        _
      // Predicated region
      $region25: #{tpu_custom_call.1} parent=11 // pred_check
        %p187 = pneg %p135
      $region26: #{tpu_custom_call.1} parent=11 // pred_check_branch
        %189 = sbr.rel (%p187) target = $region28
      $region27: #{tpu_custom_call.1} parent=11 // pred_region
        _
      $region28: #{tpu_custom_call.1} parent=11 // pred_fallthru
        _
    $region12: #{tpu_custom_call.1} parent=5 // pred_fallthru
      _
    %p190 = scmp.lt.s32.totalorder %s11, 2
    // Predicated region
    $region29: #{tpu_custom_call.1} parent=5 // pred_check
      %p191 = pneg %p190
    $region30: #{tpu_custom_call.1} parent=5 // pred_check_branch
      %193 = sbr.rel (%p191) target = $region32
    $region31: #{tpu_custom_call.1} parent=5 // pred_region
      // Predicated region
      $region33: #{tpu_custom_call.1} parent=31 // pred_check
        %p194 = pneg %p45
      $region34: #{tpu_custom_call.1} parent=31 // pred_check_branch
        %196 = sbr.rel (%p194) target = $region36
      $region35: #{tpu_custom_call.1} parent=31 // pred_region
        %s197 = smul.u32 2, %s19
        %p198 = scmp.lt.s32.totalorder %s18, 1
        %s199 = scalar_select %p198, %s18, 1
        %p200 = scmp.lt.s32.totalorder %s197, 1
        %s201 = scalar_select %p200, %s197, 1
        %s202 = smul.addr %s199, 4
        %s203 = sadd.s32 %s201, %s202
        %s204 = smul.addr %s203, 8
        %s205 = scalar_lea.vmem %s0, %s204
        %s206 = smul.u32 2, %s19
      $region36: #{tpu_custom_call.1} parent=31 // pred_fallthru
        _
    $region32: #{tpu_custom_call.1} parent=5 // pred_fallthru
      _
    %p207 = scmp.le.s32.totalorder 1, %s11
    %p208 = scmp.lt.s32.totalorder %s11, 3
    %p209 = pnand %p207, %p208
    %p210 = pneg %p209
    // Predicated region
    $region37: #{tpu_custom_call.1} parent=5 // pred_check
      _
    $region38: #{tpu_custom_call.1} parent=5 // pred_check_branch
      %212 = sbr.rel (%p209) target = $region40
    $region39: #{tpu_custom_call.1} parent=5 // pred_region
      %s213 = ssub.s32 %s11, 1
      %s214 = smul.u32 2, %s21
      %p215 = scmp.lt.s32.totalorder %s20, 1
      %s216 = scalar_select %p215, %s20, 1
      %p217 = scmp.lt.s32.totalorder %s214, 1
      %s218 = scalar_select %p217, %s214, 1
      %s219 = smul.addr %s216, 4
      %s220 = sadd.s32 %s218, %s219
      %s221 = smul.addr %s220, 8
      %s222 = scalar_lea.vmem %s0, %s221
      %p223 = pneg %p51
      %p224 = pneg %p48
      %p225 = pneg %p72
      %p226 = pneg %p69
      %p227 = pneg %p93
      %p228 = pneg %p90
      %p229 = pneg %p114
      %p230 = pneg %p111
      %p231 = pneg %p135
      %p232 = pneg %p132
      %p233 = pneg %p163
      %p234 = pneg %p160
      %s235 = smul.u32 32, %s21
      %p236 = scmp.lt.s32.totalorder %s20, 1
      %s237 = scalar_select %p236, %s20, 1
      %p238 = scmp.lt.s32.totalorder %s235, 31
      %s239 = scalar_select %p238, %s235, 31
      %s240 = smul.addr %s237, 32
      %s241 = sadd.s32 %s239, %s240
      %s242 = smul.addr %s241, 8
      %s243 = scalar_lea.vmem %s5, %s242
      %s244 = smul.u32 2, %s21
      %p245 = scmp.lt.s32.totalorder %s20, 1
      %s246 = scalar_select %p245, %s20, 1
      %p247 = scmp.lt.s32.totalorder %s244, 1
      %s248 = scalar_select %p247, %s244, 1
      %s249 = smul.addr %s246, 4
      %s250 = sadd.s32 %s248, %s249
      %s251 = smul.addr %s250, 8
      %s252 = scalar_lea.vmem %s0, %s251
      %s253 = smul.u32 2, %s21
      %s254 = smul.u32 32, %s21
      %p255 = scmp.lt.s32.totalorder %s20, 1
      %s256 = scalar_select %p255, %s20, 1
      %p257 = scmp.lt.s32.totalorder %s254, 31
      %s258 = scalar_select %p257, %s254, 31
      %s259 = smul.addr %s256, 32
      %s260 = sadd.s32 %s258, %s259
      %s261 = smul.addr %s260, 8
      %s262 = scalar_lea.vmem %s5, %s261
      %s263 = smul.u32 32, %s21
      %v264 = vld [vmem:[%s1] sm:$0xff]
      %v265 = vld [vmem:[%s1 + $0x8] sm:$0xf]
      %v266 = vld [vmem:[%s2] sm:$0xff]
      %v267 = vld [vmem:[%s2 + $0x8] sm:$0xf]
      %v268 = vld [vmem:[%s3] sm:$0xff]
      %v269 = vld [vmem:[%s4] sm:$0xff]
      %v270 = vld [vmem:[%s252] sm:$0xff]
      %v271 = vld [vmem:[%s252 + $0x8] sm:$0xff]
      %v272 = vld [vmem:[%s252 + $0x10] sm:$0xf]
      %v273 = vld [vmem:[%s252 + $0x18] sm:$0xf]
      %275 = vset.pattern.permute.xlu0 0
      %276 = vperm.xlu0 %275, %v266
      %v277 = vpop.permute.xlu0 %276
      %280 = vset.pattern.permute.xlu0 0
      %281 = vperm.xlu0 %280, %v267
      %v282 = vpop.permute.xlu0 %281
      %vm284 = vcmask 97280
      %v286 = vsel %vm284, %v264, 0
      %v289 = vsel %vm284, %v265, 0
      %vm291 = vcmask 1043456
      %v293 = vsel %vm291, %v272, 0
      %v296 = vsel %vm291, %v273, 0
      %298 = vmatprep.subr.mxu0 %v271
      %299 = vmatpush1.msra.mxu0 %v270
      %300 = vmatprep.subr.mxu0 %v296
      %301 = vmatpush1.msra.mxu0 %v293
      %302 = vmatprep.subr.mxu0 0.0
      %303 = vmatpush1.msra.mxu0 0.0
      %304 = vmatprep.subr.mxu0 0.0
      %305 = vmatpush1.msra.mxu0 0.0
      %306 = vmatprep.subr.mxu0 0.0
      %307 = vmatpush1.msra.mxu0 0.0
      %308 = vmatprep.subr.mxu0 0.0
      %309 = vmatpush1.msra.mxu0 0.0
      %310 = vmatprep.subr.mxu0 0.0
      %311 = vmatpush1.msra.mxu0 0.0
      %312 = vmatprep.subr.mxu0 0.0
      %313 = vmatpush1.msra.mxu0 0.0
      %314 = vmatprep.subr.mxu0 0.0
      %315 = vmatpush1.msra.mxu0 0.0
      %316 = vmatprep.subr.mxu0 0.0
      %317 = vmatpush1.msra.mxu0 0.0
      %318 = vmatprep.subr.mxu0 0.0
      %319 = vmatpush1.msra.mxu0 0.0
      %320 = vmatprep.subr.mxu0 0.0
      %321 = vmatpush1.msra.mxu0 0.0
      %322 = vmatprep.subr.mxu0 0.0
      %323 = vmatpush1.msra.mxu0 0.0
      %324 = vmatprep.subr.mxu0 0.0
      %325 = vmatpush1.msra.mxu0 0.0
      %326 = vmatprep.subr.mxu0 0.0
      %327 = vmatpush1.msra.mxu0 0.0
      %328 = vmatprep.subr.mxu0 0.0
      %329 = vmatpush1.msra.mxu0 0.0
      %330 = vmatprep.subr.mxu0 0.0
      %331 = vmatpush1.msra.mxu0 0.0
      %332 = vmatprep.subr.mxu0 0.0
      %333 = vmatpush1.msra.mxu0 0.0
      %334 = vmatprep.subr.mxu0 0.0
      %335 = vmatpush1.msra.mxu0 0.0
      %336 = vmatprep.subr.mxu0 0.0
      %337 = vmatpush1.msra.mxu0 0.0
      %338 = vmatprep.subr.mxu0 0.0
      %339 = vmatpush1.msra.mxu0 0.0
      %340 = vmatprep.subr.mxu0 0.0
      %341 = vmatpush1.msra.mxu0 0.0
      %342 = vmatprep.subr.mxu0 0.0
      %343 = vmatpush1.msra.mxu0 0.0
      %344 = vmatprep.subr.mxu0 0.0
      %345 = vmatpush1.msra.mxu0 0.0
      %346 = vmatprep.subr.mxu0 0.0
      %347 = vmatpush1.msra.mxu0 0.0
      %348 = vmatprep.subr.mxu0 0.0
      %349 = vmatpush1.msra.mxu0 0.0
      %350 = vmatprep.subr.mxu0 0.0
      %351 = vmatpush1.msra.mxu0 0.0
      %352 = vmatprep.subr.mxu0 0.0
      %353 = vmatpush1.msra.mxu0 0.0
      %354 = vmatprep.subr.mxu0 0.0
      %355 = vmatpush1.msra.mxu0 0.0
      %356 = vmatprep.subr.mxu0 0.0
      %357 = vmatpush1.msra.mxu0 0.0
      %358 = vmatprep.subr.mxu0 0.0
      %359 = vmatpush1.msra.mxu0 0.0
      %360 = vmatprep.subr.mxu0 0.0
      %361 = vmatpush1.msra.mxu0 0.0
      %362 = vmatprep.mubr.f32.mxu0 0.0
      %363 = vmatmul.mubr.f32.gmra.mrb[0].mxu0 %v286
      %v364 = vpop.f32.mrb[0].mxu0
      %v365 = vadd.f32 %v277, %v364
      %v366 = vpop.f32.mrb[0].mxu0
      %v367 = vadd.f32 %v277, %v366
      %368 = vmatprep.mubr.f32.mxu0 0.0
      %369 = vmatmul.mubr.f32.gmra.mrb[0].mxu0 %v289
      %v370 = vpop.f32.mrb[0].mxu0
      %v371 = vadd.f32 %v282, %v370
      %v372 = vpop.f32.mrb[0].mxu0
      %v373 = vadd.f32 %v282, %v372
      %374 = vdwg.mxu0
      %v375 = vmax.f32 %v365, 0.0
      %v376 = vmax.f32 %v367, 0.0
      %v377 = vmax.f32 %v371, 0.0
      %v378 = vmax.f32 %v373, 0.0
      %380 = vset.pattern.permute.xlu0 0
      %381 = vperm.xlu0 %380, %v269
      %v382 = vpop.permute.xlu0 %381
      %v385 = vsel %vm284, %v268, 0
      %v388 = vsel %vm291, %v377, 0
      %v391 = vsel %vm291, %v378, 0
      %393 = vmatprep.subr.mxu0 %v376
      %394 = vmatpush1.msra.mxu0 %v375
      %395 = vmatprep.subr.mxu0 %v391
      %396 = vmatpush1.msra.mxu0 %v388
      %397 = vmatprep.subr.mxu0 0.0
      %398 = vmatpush1.msra.mxu0 0.0
      %399 = vmatprep.subr.mxu0 0.0
      %400 = vmatpush1.msra.mxu0 0.0
      %401 = vmatprep.subr.mxu0 0.0
      %402 = vmatpush1.msra.mxu0 0.0
      %403 = vmatprep.subr.mxu0 0.0
      %404 = vmatpush1.msra.mxu0 0.0
      %405 = vmatprep.subr.mxu0 0.0
      %406 = vmatpush1.msra.mxu0 0.0
      %407 = vmatprep.subr.mxu0 0.0
      %408 = vmatpush1.msra.mxu0 0.0
      %409 = vmatprep.subr.mxu0 0.0
      %410 = vmatpush1.msra.mxu0 0.0
      %411 = vmatprep.subr.mxu0 0.0
      %412 = vmatpush1.msra.mxu0 0.0
      %413 = vmatprep.subr.mxu0 0.0
      %414 = vmatpush1.msra.mxu0 0.0
      %415 = vmatprep.subr.mxu0 0.0
      %416 = vmatpush1.msra.mxu0 0.0
      %417 = vmatprep.subr.mxu0 0.0
      %418 = vmatpush1.msra.mxu0 0.0
      %419 = vmatprep.subr.mxu0 0.0
      %420 = vmatpush1.msra.mxu0 0.0
      %421 = vmatprep.subr.mxu0 0.0
      %422 = vmatpush1.msra.mxu0 0.0
      %423 = vmatprep.subr.mxu0 0.0
      %424 = vmatpush1.msra.mxu0 0.0
      %425 = vmatprep.subr.mxu0 0.0
      %426 = vmatpush1.msra.mxu0 0.0
      %427 = vmatprep.subr.mxu0 0.0
      %428 = vmatpush1.msra.mxu0 0.0
      %429 = vmatprep.subr.mxu0 0.0
      %430 = vmatpush1.msra.mxu0 0.0
      %431 = vmatprep.subr.mxu0 0.0
      %432 = vmatpush1.msra.mxu0 0.0
      %433 = vmatprep.subr.mxu0 0.0
      %434 = vmatpush1.msra.mxu0 0.0
      %435 = vmatprep.subr.mxu0 0.0
      %436 = vmatpush1.msra.mxu0 0.0
      %437 = vmatprep.subr.mxu0 0.0
      %438 = vmatpush1.msra.mxu0 0.0
      %439 = vmatprep.subr.mxu0 0.0
      %440 = vmatpush1.msra.mxu0 0.0
      %441 = vmatprep.subr.mxu0 0.0
      %442 = vmatpush1.msra.mxu0 0.0
      %443 = vmatprep.subr.mxu0 0.0
      %444 = vmatpush1.msra.mxu0 0.0
      %445 = vmatprep.subr.mxu0 0.0
      %446 = vmatpush1.msra.mxu0 0.0
      %447 = vmatprep.subr.mxu0 0.0
      %448 = vmatpush1.msra.mxu0 0.0
      %449 = vmatprep.subr.mxu0 0.0
      %450 = vmatpush1.msra.mxu0 0.0
      %451 = vmatprep.subr.mxu0 0.0
      %452 = vmatpush1.msra.mxu0 0.0
      %453 = vmatprep.subr.mxu0 0.0
      %454 = vmatpush1.msra.mxu0 0.0
      %455 = vmatprep.subr.mxu0 0.0
      %456 = vmatpush1.msra.mxu0 0.0
      %457 = vmatprep.mubr.f32.mxu0 0.0
      %458 = vmatmul.mubr.f32.gmra.mrb[0].mxu0 %v385
      %v459 = vpop.f32.mrb[0].mxu0
      %v460 = vadd.f32 %v382, %v459
      %v461 = vpop.f32.mrb[0].mxu0
      %v462 = vadd.f32 %v382, %v461
      %463 = vdwg.mxu0
      %464 = vxpose.xlu0.b32.start [1/16] %v460, 128
      %465 = vxpose.xlu0.b32.cont [2/16] 0.0, 128
      %466 = vxpose.xlu0.b32.cont [3/16] 0.0, 128
      %467 = vxpose.xlu0.b32.cont [4/16] 0.0, 128
      %468 = vxpose.xlu0.b32.cont [5/16] 0.0, 128
      %469 = vxpose.xlu0.b32.cont [6/16] 0.0, 128
      %470 = vxpose.xlu0.b32.cont [7/16] 0.0, 128
      %471 = vxpose.xlu0.b32.cont [8/16] 0.0, 128
      %472 = vxpose.xlu0.b32.cont [9/16] 0.0, 128
      %473 = vxpose.xlu0.b32.cont [10/16] 0.0, 128
      %474 = vxpose.xlu0.b32.cont [11/16] 0.0, 128
      %475 = vxpose.xlu0.b32.cont [12/16] 0.0, 128
      %476 = vxpose.xlu0.b32.cont [13/16] 0.0, 128
      %477 = vxpose.xlu0.b32.cont [14/16] 0.0, 128
      %478 = vxpose.xlu0.b32.cont [15/16] 0.0, 128
      %479 = vxpose.xlu0.b32.end [16/16] 0.0, 128
      %v480 = vpop.trf.xlu0
      %v481 = vpop.trf.xlu0
      %v482 = vpop.trf.xlu0
      %v483 = vpop.trf.xlu0
      %v484 = vpop.trf.xlu0
      %v485 = vpop.trf.xlu0
      %v486 = vpop.trf.xlu0
      %v487 = vpop.trf.xlu0
      %v488 = vpop.trf.xlu0
      %v489 = vpop.trf.xlu0
      %v490 = vpop.trf.xlu0
      %v491 = vpop.trf.xlu0
      %v492 = vpop.trf.xlu0
      %v493 = vpop.trf.xlu0
      %v494 = vpop.trf.xlu0
      %v495 = vpop.trf.xlu0
      %496 = vxpose.xlu0.b32.start [1/16] %v462, 128
      %497 = vxpose.xlu0.b32.cont [2/16] 0.0, 128
      %498 = vxpose.xlu0.b32.cont [3/16] 0.0, 128
      %499 = vxpose.xlu0.b32.cont [4/16] 0.0, 128
      %500 = vxpose.xlu0.b32.cont [5/16] 0.0, 128
      %501 = vxpose.xlu0.b32.cont [6/16] 0.0, 128
      %502 = vxpose.xlu0.b32.cont [7/16] 0.0, 128
      %503 = vxpose.xlu0.b32.cont [8/16] 0.0, 128
      %504 = vxpose.xlu0.b32.cont [9/16] 0.0, 128
      %505 = vxpose.xlu0.b32.cont [10/16] 0.0, 128
      %506 = vxpose.xlu0.b32.cont [11/16] 0.0, 128
      %507 = vxpose.xlu0.b32.cont [12/16] 0.0, 128
      %508 = vxpose.xlu0.b32.cont [13/16] 0.0, 128
      %509 = vxpose.xlu0.b32.cont [14/16] 0.0, 128
      %510 = vxpose.xlu0.b32.cont [15/16] 0.0, 128
      %511 = vxpose.xlu0.b32.end [16/16] 0.0, 128
      %v512 = vpop.trf.xlu0
      %v513 = vpop.trf.xlu0
      %v514 = vpop.trf.xlu0
      %v515 = vpop.trf.xlu0
      %v516 = vpop.trf.xlu0
      %v517 = vpop.trf.xlu0
      %v518 = vpop.trf.xlu0
      %v519 = vpop.trf.xlu0
      %v520 = vpop.trf.xlu0
      %v521 = vpop.trf.xlu0
      %v522 = vpop.trf.xlu0
      %v523 = vpop.trf.xlu0
      %v524 = vpop.trf.xlu0
      %v525 = vpop.trf.xlu0
      %v526 = vpop.trf.xlu0
      %v527 = vpop.trf.xlu0
      %vm528 = vcmask 64512
      %529 = vst.msk [vmem:[%s262] sm:$0xff] %vm528, %v480
      %530 = vst.msk [vmem:[%s262 + $0x8] sm:$0xff] %vm528, %v481
      %531 = vst.msk [vmem:[%s262 + $0x10] sm:$0xff] %vm528, %v482
      %532 = vst.msk [vmem:[%s262 + $0x18] sm:$0xff] %vm528, %v483
      %533 = vst.msk [vmem:[%s262 + $0x20] sm:$0xff] %vm528, %v484
      %534 = vst.msk [vmem:[%s262 + $0x28] sm:$0xff] %vm528, %v485
      %535 = vst.msk [vmem:[%s262 + $0x30] sm:$0xff] %vm528, %v486
      %536 = vst.msk [vmem:[%s262 + $0x38] sm:$0xff] %vm528, %v487
      %537 = vst.msk [vmem:[%s262 + $0x40] sm:$0xff] %vm528, %v488
      %538 = vst.msk [vmem:[%s262 + $0x48] sm:$0xff] %vm528, %v489
      %539 = vst.msk [vmem:[%s262 + $0x50] sm:$0xff] %vm528, %v490
      %540 = vst.msk [vmem:[%s262 + $0x58] sm:$0xff] %vm528, %v491
      %541 = vst.msk [vmem:[%s262 + $0x60] sm:$0xff] %vm528, %v492
      %542 = vst.msk [vmem:[%s262 + $0x68] sm:$0xff] %vm528, %v493
      %543 = vst.msk [vmem:[%s262 + $0x70] sm:$0xff] %vm528, %v494
      %544 = vst.msk [vmem:[%s262 + $0x78] sm:$0xff] %vm528, %v495
      %545 = vst.msk [vmem:[%s262 + $0x80] sm:$0xff] %vm528, %v512
      %546 = vst.msk [vmem:[%s262 + $0x88] sm:$0xff] %vm528, %v513
      %547 = vst.msk [vmem:[%s262 + $0x90] sm:$0xff] %vm528, %v514
      %548 = vst.msk [vmem:[%s262 + $0x98] sm:$0xff] %vm528, %v515
      %549 = vst.msk [vmem:[%s262 + $0xa0] sm:$0xff] %vm528, %v516
      %550 = vst.msk [vmem:[%s262 + $0xa8] sm:$0xff] %vm528, %v517
      %551 = vst.msk [vmem:[%s262 + $0xb0] sm:$0xff] %vm528, %v518
      %552 = vst.msk [vmem:[%s262 + $0xb8] sm:$0xff] %vm528, %v519
      %553 = vst.msk [vmem:[%s262 + $0xc0] sm:$0xff] %vm528, %v520
      %554 = vst.msk [vmem:[%s262 + $0xc8] sm:$0xff] %vm528, %v521
      %555 = vst.msk [vmem:[%s262 + $0xd0] sm:$0xff] %vm528, %v522
      %556 = vst.msk [vmem:[%s262 + $0xd8] sm:$0xff] %vm528, %v523
      %557 = vst.msk [vmem:[%s262 + $0xe0] sm:$0xff] %vm528, %v524
      %558 = vst.msk [vmem:[%s262 + $0xe8] sm:$0xff] %vm528, %v525
      %559 = vst.msk [vmem:[%s262 + $0xf0] sm:$0xff] %vm528, %v526
      %560 = vst.msk [vmem:[%s262 + $0xf8] sm:$0xff] %vm528, %v527
      %s561 = smul.u32 32, %s21
      %p562 = scmp.lt.s32.totalorder %s20, 1
      %s563 = scalar_select %p562, %s20, 1
      %p564 = scmp.lt.s32.totalorder %s561, 31
      %s565 = scalar_select %p564, %s561, 31
      %s566 = smul.addr %s563, 32
      %s567 = sadd.s32 %s565, %s566
      %s568 = smul.addr %s567, 8
      %s569 = scalar_lea.vmem %s5, %s568
      // Predicated region
      $region41: #{tpu_custom_call.1} parent=39 // pred_check
        %p570 = pneg %p160
      $region42: #{tpu_custom_call.1} parent=39 // pred_check_branch
        %572 = sbr.rel (%p570) target = $region44
      $region43: #{tpu_custom_call.1} parent=39 // pred_region
        %s573 = smul.u32 32, %s21
      $region44: #{tpu_custom_call.1} parent=39 // pred_fallthru
        _
    $region40: #{tpu_custom_call.1} parent=5 // pred_fallthru
      _
    %p574 = scmp.le.s32.totalorder 2, %s11
    // Predicated region
    $region45: #{tpu_custom_call.1} parent=5 // pred_check
      %p575 = pneg %p574
    $region46: #{tpu_custom_call.1} parent=5 // pred_check_branch
      %577 = sbr.rel (%p575) target = $region48
    $region47: #{tpu_custom_call.1} parent=5 // pred_region
      %s578 = ssub.s32 %s11, 2
      // Predicated region
      $region49: #{tpu_custom_call.1} parent=47 // pred_check
        %p579 = pneg %p166
      $region50: #{tpu_custom_call.1} parent=47 // pred_check_branch
        %581 = sbr.rel (%p579) target = $region52
      $region51: #{tpu_custom_call.1} parent=47 // pred_region
        %s582 = smul.u32 32, %s23
        %p583 = scmp.lt.s32.totalorder %s22, 1
        %s584 = scalar_select %p583, %s22, 1
        %p585 = scmp.lt.s32.totalorder %s582, 31
        %s586 = scalar_select %p585, %s582, 31
        %s587 = smul.addr %s584, 32
        %s588 = sadd.s32 %s586, %s587
        %s589 = smul.addr %s588, 8
        %s590 = scalar_lea.vmem %s5, %s589
      $region52: #{tpu_custom_call.1} parent=47 // pred_fallthru
        _
    $region48: #{tpu_custom_call.1} parent=5 // pred_fallthru
      _
  $region6: #{tpu_custom_call.1} parent=0 // loop_footer
    %s15 = sadd.s32 1, %s11
  $region7: #{tpu_custom_call.1} parent=0 // loop_footer_branch
    %10 = sbr.rel target = $region3
  $region8: #{tpu_custom_call.1} parent=0 // loop_exit
    _

</llo_original>
